<compile_context>
chip_gen: v7x
topology: tpu7x:2x2x1
jax: 0.10.0
libtpu: 0.0.40
codegen_flags: <defaults>
</compile_context>

<pallas_src>
from functools import partial

import jax
import jax.numpy as jnp
from jax.experimental import pallas as pl
from jax.experimental.pallas import tpu as pltpu


def _round_up(x, m):
    return ((x + m - 1) // m) * m


# ----------------------------------------------------------------------------
# Fused forward kernel (single invocation, everything resident in VMEM/vregs)
# ----------------------------------------------------------------------------
def _fused_forward_kernel(n_hidden, n_classes, batch, hw, *refs):
    cols_ref, wc_ref, bc_ref = refs[0:3]
    hidden_refs = refs[3:3 + 2 * n_hidden]
    wf_ref, bf_ref, o_ref, h8_ref = refs[3 + 2 * n_hidden:]

    # --- stand-in base_model: 3x3 conv as im2col matmul + bias + ReLU -------
    # cols: (B*H*W, Kp) bf16 (K=C*9 zero-padded to 128), wc: (Kp, Fp) bf16.
    feat = jnp.dot(cols_ref[...], wc_ref[...],
                   preferred_element_type=jnp.float32)           # (B*H*W, Fp)
    feat = jnp.maximum(feat + bc_ref[...], 0.0)                  # padded lanes 0

    # --- global average pool: per-batch cross-sublane reduction (XLU) -------
    # Replaces the old dense (B, B*H*W) f32 pooling matmul.  Also pads the
    # batch/sublane dim to 8 via the scratch buffer (zero rows).
    inv_hw = 1.0 / float(hw)
    h8_ref[...] = jnp.zeros_like(h8_ref)                         # zero pad rows
    for b in range(batch):                                       # static loop
        h8_ref[b:b + 1, :] = inv_hw * jnp.sum(
            feat[b * hw:(b + 1) * hw, :], axis=0, keepdims=True)
    h = h8_ref[...].astype(jnp.bfloat16)                         # (8, Fp) bf16

    # --- hidden fc blocks: Dropout (identity in eval) -> Linear -> ReLU -----
    for i in range(n_hidden):
        w_ref = hidden_refs[2 * i]        # (in_p, out_p) bf16, pre-transposed
        b_ref = hidden_refs[2 * i + 1]    # (1, out_p) f32, zero-padded
        hf = jnp.dot(h, w_ref[...], preferred_element_type=jnp.float32)
        h = jnp.maximum(hf + b_ref[...], 0.0).astype(jnp.bfloat16)

    # --- fc_final: Dropout (identity) -> Linear -> Softmax(dim=1) -----------
    logits = jnp.dot(h, wf_ref[...],
                     preferred_element_type=jnp.float32) + bf_ref[...]  # (8, Np)
    # Classifier output is lane-padded to 128: mask padded columns so they do
    # not contribute to the softmax denominator.
    col = jax.lax.broadcasted_iota(jnp.int32, logits.shape, dimension=1)
    logits = jnp.where(col < n_classes, logits, -1e30)
    m = jnp.max(logits, axis=1, keepdims=True)
    e = jnp.exp(logits - m)
    denom = jnp.sum(e, axis=1, keepdims=True)
    o_ref[...] = (e / denom).astype(o_ref.dtype)   # exact divide: rows sum to 1


def fused_forward(cols, conv_wT, conv_b2, hidden_wb, final_wT, final_b2,
                  *, batch, hw, n_classes):
    bpad = _round_up(max(batch, 1), 8)
    fpad = conv_wT.shape[1]
    npad = final_wT.shape[1]

    args = [cols, conv_wT, conv_b2]
    for w, b in hidden_wb:
        args.extend((w, b))
    args.extend((final_wT, final_b2))

    out_padded = pl.pallas_call(
        partial(_fused_forward_kernel, len(hidden_wb), n_classes, batch, hw),
        out_shape=jax.ShapeDtypeStruct((bpad, npad), jnp.float32),
        in_specs=[pl.BlockSpec(memory_space=pltpu.MemorySpace.VMEM)] * len(args),
        out_specs=pl.BlockSpec(memory_space=pltpu.MemorySpace.VMEM),
        scratch_shapes=[pltpu.VMEM((bpad, fpad), jnp.float32)],
        compiler_params=pltpu.CompilerParams(
            vmem_limit_bytes=32 * 1024 * 1024),
    )(*args)
    return out_padded[:batch, :n_classes]


# ----------------------------------------------------------------------------
# Wrapper-side (XLA) glue: im2col (x-dependent) runs per forward call
# ----------------------------------------------------------------------------
def _im2col_3x3_padded(x, kpad):
    """x: (B, C, H, W) NCHW -> rows (B*H*W, kpad) bf16, C-major then (kh, kw)."""
    B, C, H, W = x.shape
    xp = jnp.pad(x, ((0, 0), (0, 0), (1, 1), (1, 1)))
    patches = [xp[:, :, dy:dy + H, dx:dx + W]
               for dy in range(3) for dx in range(3)]
    p = jnp.stack(patches, axis=0)               # (9, B, C, H, W)
    p = jnp.transpose(p, (1, 3, 4, 2, 0))        # (B, H, W, C, 9)
    cols = p.reshape(B * H * W, C * 9)
    cols = jnp.pad(cols, ((0, 0), (0, kpad - C * 9)))
    return cols.astype(jnp.bfloat16)


# ----------------------------------------------------------------------------
# Model: parameters + one-time prep + forward (mirrors SimpleCNN.forward, eval)
# ----------------------------------------------------------------------------
def init_params(key, *, in_channels, in_features, n_layers,
                list_neuronas_salida, n_classes):
    params = {}
    k_cw, k_cb, key = jax.random.split(key, 3)
    # stand-in base_model: conv3x3 (in_channels -> in_features) + ReLU + GAP
    params["conv_w"] = 0.1 * jax.random.normal(
        k_cw, (in_features, in_channels, 3, 3), jnp.float32)
    params["conv_b"] = 0.1 * jax.random.normal(
        k_cb, (in_features,), jnp.float32)

    prev = in_features
    for i in range(1, n_layers - 1):
        out = list_neuronas_salida[i]
        kw, kb, key = jax.random.split(key, 3)
        params[f"fc{i}_w"] = 0.1 * jax.random.normal(kw, (out, prev), jnp.float32)
        params[f"fc{i}_b"] = 0.1 * jax.random.normal(kb, (out,), jnp.float32)
        prev = out

    kw, kb, key = jax.random.split(key, 3)
    final_in = list_neuronas_salida[-2]
    params["fc_final_w"] = 0.1 * jax.random.normal(
        kw, (n_classes, final_in), jnp.float32)
    params["fc_final_b"] = 0.1 * jax.random.normal(
        kb, (n_classes,), jnp.float32)
    return params


def prepare_params(params, *, in_channels, in_features, n_layers, n_classes):
    """One-time transpose / lane-pad-to-128 / bf16 cast of all weights."""
    C = in_channels
    kpad = _round_up(C * 9, 128)
    fpad = _round_up(in_features, 128)
    npad = _round_up(n_classes, 128)

    wc = params["conv_w"].reshape(in_features, C * 9).T            # (C*9, F)
    wc = jnp.pad(wc, ((0, kpad - C * 9),
                      (0, fpad - in_features))).astype(jnp.bfloat16)
    bc = jnp.pad(params["conv_b"].reshape(1, -1),
                 ((0, 0), (0, fpad - in_features)))                # (1, Fp) f32

    hidden_wb = []
    prev, prev_p = in_features, fpad
    for i in range(1, n_layers - 1):
        w = params[f"fc{i}_w"]                                     # (out, prev)
        out = w.shape[0]
        out_p = _round_up(out, 128)
        wt = jnp.pad(w.T, ((0, prev_p - prev),
                           (0, out_p - out))).astype(jnp.bfloat16)  # (in_p,out_p)
        bt = jnp.pad(params[f"fc{i}_b"].reshape(1, -1),
                     ((0, 0), (0, out_p - out)))                   # (1, out_p)
        hidden_wb.append((wt, bt))
        prev, prev_p = out, out_p

    wf = params["fc_final_w"].T                                    # (in, n_cls)
    wf = jnp.pad(wf, ((0, prev_p - prev),
                      (0, npad - n_classes))).astype(jnp.bfloat16)
    bf = jnp.pad(params["fc_final_b"].reshape(1, -1),
                 ((0, 0), (0, npad - n_classes)))                  # (1, Np) f32

    return {"wc": wc, "bc": bc, "hidden_wb": hidden_wb, "wf": wf, "bf": bf,
            "kpad": kpad}


def simple_cnn_forward(x, prep, *, n_classes):
    B, C, H, W = x.shape
    cols = _im2col_3x3_padded(x, prep["kpad"])                     # (B*H*W, Kp)
    return fused_forward(cols, prep["wc"], prep["bc"], prep["hidden_wb"],
                         prep["wf"], prep["bf"],
                         batch=B, hw=H * W, n_classes=n_classes)


# ----------------------------------------------------------------------------
# Pure-JAX f32 reference (same stand-in base_model) for correctness checking
# ----------------------------------------------------------------------------
def _reference_forward(x, params, *, n_layers, n_classes):
    feat = jax.lax.conv_general_dilated(
        x, params["conv_w"], (1, 1), "SAME",
        dimension_numbers=("NCHW", "OIHW", "NCHW"))
    feat = jnp.maximum(feat + params["conv_b"][None, :, None, None], 0.0)
    h = feat.mean(axis=(2, 3))
    for i in range(1, n_layers - 1):
        h = jnp.maximum(h @ params[f"fc{i}_w"].T + params[f"fc{i}_b"], 0.0)
    logits = h @ params["fc_final_w"].T + params["fc_final_b"]
    return jax.nn.softmax(logits, axis=1)


# ----------------------------------------------------------------------------
if __name__ == "__main__":
    # Small, module-consistent configuration.
    B, C, H, W = 2, 4, 16, 16
    in_features = 32                 # base_model.fc.in_features (stand-in)
    n_layers = 4                     # -> hidden fc1, fc2, then fc_final
    n_classes = 8
    list_neuronas_salida = [in_features, 64, 32, n_classes]   # [-2] == 32
    # list_dropouts = [0.0, 0.2, 0.2, 0.3]  # identity in eval-mode forward

    key = jax.random.PRNGKey(0)
    k_x, k_p = jax.random.split(key)
    x = jax.random.normal(k_x, (B, C, H, W), jnp.float32)

    params = init_params(
        k_p, in_channels=C, in_features=in_features, n_layers=n_layers,
        list_neuronas_salida=list_neuronas_salida, n_classes=n_classes)

    # One-time weight prep (transpose / pad / bf16) hoisted out of forward.
    prep = prepare_params(params, in_channels=C, in_features=in_features,
                          n_layers=n_layers, n_classes=n_classes)

    fwd = jax.jit(lambda xx: simple_cnn_forward(xx, prep, n_classes=n_classes))
    out = jax.block_until_ready(fwd(x))

    assert out.shape == (B, n_classes)
    # Exact-divide softmax: rows sum to 1 to f32 precision.
    assert bool(jnp.allclose(jnp.sum(out, axis=1), 1.0, atol=1e-4))
    # bf16 matmul path vs f32 reference.
    ref = _reference_forward(x, params, n_layers=n_layers, n_classes=n_classes)
    assert bool(jnp.allclose(out, ref, atol=3e-2))
    print("KERNEL_OK")
</pallas_src>

<mosaic_0001>
module attributes {stable_mosaic.version = 11 : i64} {
  func.func @_fused_forward_kernel(%arg0: memref<512x128xbf16, #tpu.memory_space<vmem>>, %arg1: memref<128x128xbf16, #tpu.memory_space<vmem>>, %arg2: memref<1x128xf32, #tpu.memory_space<vmem>>, %arg3: memref<128x128xbf16, #tpu.memory_space<vmem>>, %arg4: memref<1x128xf32, #tpu.memory_space<vmem>>, %arg5: memref<128x128xbf16, #tpu.memory_space<vmem>>, %arg6: memref<1x128xf32, #tpu.memory_space<vmem>>, %arg7: memref<128x128xbf16, #tpu.memory_space<vmem>>, %arg8: memref<1x128xf32, #tpu.memory_space<vmem>>, %arg9: memref<8x128xf32, #tpu.memory_space<vmem>>, %arg10: memref<8x128xf32, #tpu.memory_space<vmem>>) attributes {dimension_semantics = [], scalar_prefetch = 0 : i64, scratch_operands = 1 : i64, tpu.core_type = #tpu.core_type<tc>} {
    %c0 = arith.constant 0 : index
    %c0_0 = arith.constant 0 : index
    %0 = vector.load %arg0[%c0, %c0_0] : memref<512x128xbf16, #tpu.memory_space<vmem>>, vector<512x128xbf16>
    %c0_1 = arith.constant 0 : index
    %c0_2 = arith.constant 0 : index
    %1 = vector.load %arg1[%c0_1, %c0_2] : memref<128x128xbf16, #tpu.memory_space<vmem>>, vector<128x128xbf16>
    %cst = arith.constant dense<0.000000e+00> : vector<512x128xf32>
    %2 = tpu.matmul %0, %1, %cst {dimension_numbers = #tpu.dot_dimension_numbers<[1], [0], [0], [1], [0, 0, 1, 1], [], []>} : vector<512x128xbf16>, vector<128x128xbf16>, vector<512x128xf32> -> vector<512x128xf32>
    %c0_3 = arith.constant 0 : index
    %c0_4 = arith.constant 0 : index
    %3 = vector.load %arg2[%c0_3, %c0_4] : memref<1x128xf32, #tpu.memory_space<vmem>>, vector<1x128xf32>
    %4 = vector.broadcast %3 : vector<1x128xf32> to vector<512x128xf32>
    %5 = arith.addf %2, %4 : vector<512x128xf32>
    %cst_5 = arith.constant 0.000000e+00 : f32
    %6 = vector.broadcast %cst_5 : f32 to vector<512x128xf32>
    %7 = arith.maximumf %5, %6 : vector<512x128xf32>
    %cst_6 = arith.constant 0.000000e+00 : f32
    %8 = vector.broadcast %cst_6 : f32 to vector<8x128xf32>
    %c0_7 = arith.constant 0 : index
    %c0_8 = arith.constant 0 : index
    %9 = vector.load %arg10[%c0_7, %c0_8] : memref<8x128xf32, #tpu.memory_space<vmem>>, vector<8x128xf32>
    tpu.vector_store %arg10[%c0_7, %c0_8], %8 {strides = array<i32>} : memref<8x128xf32, #tpu.memory_space<vmem>>, vector<8x128xf32>,
    %10 = vector.extract_strided_slice %7 {offsets = [0, 0], sizes = [256, 128], strides = [1, 1]} : vector<512x128xf32> to vector<256x128xf32>
    %cst_9 = arith.constant dense<0.000000e+00> : vector<128xf32>
    %11 = vector.multi_reduction <add>, %10, %cst_9 [0] : vector<256x128xf32> to vector<128xf32>
    %12 = vector.shape_cast %11 : vector<128xf32> to vector<1x128xf32>
    %cst_10 = arith.constant 3.906250e-03 : f32
    %13 = vector.broadcast %cst_10 : f32 to vector<1x128xf32>
    %14 = arith.mulf %13, %12 : vector<1x128xf32>
    %c0_11 = arith.constant 0 : index
    %c0_12 = arith.constant 0 : index
    %15 = vector.load %arg10[%c0_11, %c0_12] : memref<8x128xf32, #tpu.memory_space<vmem>>, vector<1x128xf32>
    tpu.vector_store %arg10[%c0_11, %c0_12], %14 {strides = array<i32>} : memref<8x128xf32, #tpu.memory_space<vmem>>, vector<1x128xf32>,
    %16 = vector.extract_strided_slice %7 {offsets = [256, 0], sizes = [256, 128], strides = [1, 1]} : vector<512x128xf32> to vector<256x128xf32>
    %cst_13 = arith.constant dense<0.000000e+00> : vector<128xf32>
    %17 = vector.multi_reduction <add>, %16, %cst_13 [0] : vector<256x128xf32> to vector<128xf32>
    %18 = vector.shape_cast %17 : vector<128xf32> to vector<1x128xf32>
    %cst_14 = arith.constant 3.906250e-03 : f32
    %19 = vector.broadcast %cst_14 : f32 to vector<1x128xf32>
    %20 = arith.mulf %19, %18 : vector<1x128xf32>
    %c1 = arith.constant 1 : index
    %c0_15 = arith.constant 0 : index
    %21 = vector.load %arg10[%c1, %c0_15] : memref<8x128xf32, #tpu.memory_space<vmem>>, vector<1x128xf32>
    tpu.vector_store %arg10[%c1, %c0_15], %20 {strides = array<i32>} : memref<8x128xf32, #tpu.memory_space<vmem>>, vector<1x128xf32>,
    %c0_16 = arith.constant 0 : index
    %c0_17 = arith.constant 0 : index
    %22 = vector.load %arg10[%c0_16, %c0_17] : memref<8x128xf32, #tpu.memory_space<vmem>>, vector<8x128xf32>
    %23 = arith.truncf %22 : vector<8x128xf32> to vector<8x128xbf16>
    %c0_18 = arith.constant 0 : index
    %c0_19 = arith.constant 0 : index
    %24 = vector.load %arg3[%c0_18, %c0_19] : memref<128x128xbf16, #tpu.memory_space<vmem>>, vector<128x128xbf16>
    %cst_20 = arith.constant dense<0.000000e+00> : vector<8x128xf32>
    %25 = tpu.matmul %23, %24, %cst_20 {dimension_numbers = #tpu.dot_dimension_numbers<[1], [0], [0], [1], [0, 0, 1, 1], [], []>} : vector<8x128xbf16>, vector<128x128xbf16>, vector<8x128xf32> -> vector<8x128xf32>
    %c0_21 = arith.constant 0 : index
    %c0_22 = arith.constant 0 : index
    %26 = vector.load %arg4[%c0_21, %c0_22] : memref<1x128xf32, #tpu.memory_space<vmem>>, vector<1x128xf32>
    %27 = vector.broadcast %26 : vector<1x128xf32> to vector<8x128xf32>
    %28 = arith.addf %25, %27 : vector<8x128xf32>
    %cst_23 = arith.constant 0.000000e+00 : f32
    %29 = vector.broadcast %cst_23 : f32 to vector<8x128xf32>
    %30 = arith.maximumf %28, %29 : vector<8x128xf32>
    %31 = arith.truncf %30 : vector<8x128xf32> to vector<8x128xbf16>
    %c0_24 = arith.constant 0 : index
    %c0_25 = arith.constant 0 : index
    %32 = vector.load %arg5[%c0_24, %c0_25] : memref<128x128xbf16, #tpu.memory_space<vmem>>, vector<128x128xbf16>
    %cst_26 = arith.constant dense<0.000000e+00> : vector<8x128xf32>
    %33 = tpu.matmul %31, %32, %cst_26 {dimension_numbers = #tpu.dot_dimension_numbers<[1], [0], [0], [1], [0, 0, 1, 1], [], []>} : vector<8x128xbf16>, vector<128x128xbf16>, vector<8x128xf32> -> vector<8x128xf32>
    %c0_27 = arith.constant 0 : index
    %c0_28 = arith.constant 0 : index
    %34 = vector.load %arg6[%c0_27, %c0_28] : memref<1x128xf32, #tpu.memory_space<vmem>>, vector<1x128xf32>
    %35 = vector.broadcast %34 : vector<1x128xf32> to vector<8x128xf32>
    %36 = arith.addf %33, %35 : vector<8x128xf32>
    %cst_29 = arith.constant 0.000000e+00 : f32
    %37 = vector.broadcast %cst_29 : f32 to vector<8x128xf32>
    %38 = arith.maximumf %36, %37 : vector<8x128xf32>
    %39 = arith.truncf %38 : vector<8x128xf32> to vector<8x128xbf16>
    %c0_30 = arith.constant 0 : index
    %c0_31 = arith.constant 0 : index
    %40 = vector.load %arg7[%c0_30, %c0_31] : memref<128x128xbf16, #tpu.memory_space<vmem>>, vector<128x128xbf16>
    %cst_32 = arith.constant dense<0.000000e+00> : vector<8x128xf32>
    %41 = tpu.matmul %39, %40, %cst_32 {dimension_numbers = #tpu.dot_dimension_numbers<[1], [0], [0], [1], [0, 0, 1, 1], [], []>} : vector<8x128xbf16>, vector<128x128xbf16>, vector<8x128xf32> -> vector<8x128xf32>
    %c0_33 = arith.constant 0 : index
    %c0_34 = arith.constant 0 : index
    %42 = vector.load %arg8[%c0_33, %c0_34] : memref<1x128xf32, #tpu.memory_space<vmem>>, vector<1x128xf32>
    %43 = vector.broadcast %42 : vector<1x128xf32> to vector<8x128xf32>
    %44 = arith.addf %41, %43 : vector<8x128xf32>
    %45 = tpu.iota {dimensions = array<i32: 1>} : vector<8x128xi32>
    %c8_i32 = arith.constant 8 : i32
    %46 = vector.broadcast %c8_i32 : i32 to vector<8x128xi32>
    %47 = arith.cmpi slt, %45, %46 : vector<8x128xi32>
    %cst_35 = arith.constant -1.000000e+30 : f32
    %48 = vector.broadcast %cst_35 : f32 to vector<8x128xf32>
    %49 = arith.select %47, %44, %48 : vector<8x128xi1>, vector<8x128xf32>
    %cst_36 = arith.constant dense<0xFF800000> : vector<8xf32>
    %50 = vector.multi_reduction <maximumf>, %49, %cst_36 [1] : vector<8x128xf32> to vector<8xf32>
    %51 = vector.shape_cast %50 : vector<8xf32> to vector<8x1xf32>
    %52 = vector.broadcast %51 : vector<8x1xf32> to vector<8x128xf32>
    %53 = arith.subf %49, %52 : vector<8x128xf32>
    %54 = math.exp %53 : vector<8x128xf32>
    %cst_37 = arith.constant dense<0.000000e+00> : vector<8xf32>
    %55 = vector.multi_reduction <add>, %54, %cst_37 [1] : vector<8x128xf32> to vector<8xf32>
    %56 = vector.shape_cast %55 : vector<8xf32> to vector<8x1xf32>
    %57 = vector.broadcast %56 : vector<8x1xf32> to vector<8x128xf32>
    %58 = arith.divf %54, %57 : vector<8x128xf32>
    %c0_38 = arith.constant 0 : index
    %c0_39 = arith.constant 0 : index
    %59 = vector.load %arg9[%c0_38, %c0_39] : memref<8x128xf32, #tpu.memory_space<vmem>>, vector<8x128xf32>
    tpu.vector_store %arg9[%c0_38, %c0_39], %58 {strides = array<i32>} : memref<8x128xf32, #tpu.memory_space<vmem>>, vector<8x128xf32>,
    return
  }
}

</mosaic_0001>

<llo_original>
// kernel: _lambda_.1
$region0: #{_lambda_.1}
  #allocation0 [shape = 'u32[]', space=smem, size = 0x4, offset = 0x4, fixed_abs, tag = 'smem constant byte address 0x4 - core index']
  #allocation1 [shape = 'u32[144,128]{1,0:T(1,128)}', space=vmem, size = 0x12000, scoped, tag = 'internal scratch']
  #allocation2 [shape = 'f32[8,128]{1,0:T(8,128)}', space=vmem, size = 0x1000, scoped, tag = 'scratch operand']
  %s0 = inlined_call_operand.vmem [shape: bf16[512,128], index: 0, kind: input, shape index: {}]
  %s1 = inlined_call_operand.vmem [shape: bf16[128,128], index: 1, kind: input, shape index: {}]
  %s2 = inlined_call_operand.vmem [shape: f32[1,128], index: 2, kind: input, shape index: {}]
  %s3 = inlined_call_operand.vmem [shape: bf16[128,128], index: 3, kind: input, shape index: {}]
  %s4 = inlined_call_operand.vmem [shape: f32[1,128], index: 4, kind: input, shape index: {}]
  %s5 = inlined_call_operand.vmem [shape: bf16[128,128], index: 5, kind: input, shape index: {}]
  %s6 = inlined_call_operand.vmem [shape: f32[1,128], index: 6, kind: input, shape index: {}]
  %s7 = inlined_call_operand.vmem [shape: bf16[128,128], index: 7, kind: input, shape index: {}]
  %s8 = inlined_call_operand.vmem [shape: f32[1,128], index: 8, kind: input, shape index: {}]
  %s9 = inlined_call_operand.vmem [shape: f32[8,128], index: 9, kind: output, shape index: {}]
  %s10 = sld [smem:[#allocation0]]
  $region46: #{_lambda_.1} parent=0
    _
  %s12 = ssub.s32 1, %s10
  %s13 = scalar_select 0, %s12, %s10
  // Predicated region
  $region2: #{_lambda_.1} parent=0 // pred_check
    _
  $region3: #{_lambda_.1} parent=0 // pred_check_branch
    %15 = sbr.rel (0) target = $region5
  $region4: #{_lambda_.1} parent=0 // pred_region
    _
  $region5: #{_lambda_.1} parent=0 // pred_fallthru
    _
  // Predicated region
  $region6: #{_lambda_.1} parent=0 // pred_check
    _
  $region7: #{_lambda_.1} parent=0 // pred_check_branch
    %17 = sbr.rel (0) target = $region9
  $region8: #{_lambda_.1} parent=0 // pred_region
    _
  $region9: #{_lambda_.1} parent=0 // pred_fallthru
    _
  // Predicated region
  $region10: #{_lambda_.1} parent=0 // pred_check
    _
  $region11: #{_lambda_.1} parent=0 // pred_check_branch
    %19 = sbr.rel (0) target = $region13
  $region12: #{_lambda_.1} parent=0 // pred_region
    _
  $region13: #{_lambda_.1} parent=0 // pred_fallthru
    _
  // Predicated region
  $region14: #{_lambda_.1} parent=0 // pred_check
    _
  $region15: #{_lambda_.1} parent=0 // pred_check_branch
    %21 = sbr.rel (0) target = $region17
  $region16: #{_lambda_.1} parent=0 // pred_region
    _
  $region17: #{_lambda_.1} parent=0 // pred_fallthru
    _
  // Predicated region
  $region18: #{_lambda_.1} parent=0 // pred_check
    _
  $region19: #{_lambda_.1} parent=0 // pred_check_branch
    %23 = sbr.rel (0) target = $region21
  $region20: #{_lambda_.1} parent=0 // pred_region
    _
  $region21: #{_lambda_.1} parent=0 // pred_fallthru
    _
  // Predicated region
  $region22: #{_lambda_.1} parent=0 // pred_check
    _
  $region23: #{_lambda_.1} parent=0 // pred_check_branch
    %25 = sbr.rel (0) target = $region25
  $region24: #{_lambda_.1} parent=0 // pred_region
    _
  $region25: #{_lambda_.1} parent=0 // pred_fallthru
    _
  // Predicated region
  $region26: #{_lambda_.1} parent=0 // pred_check
    _
  $region27: #{_lambda_.1} parent=0 // pred_check_branch
    %27 = sbr.rel (0) target = $region29
  $region28: #{_lambda_.1} parent=0 // pred_region
    _
  $region29: #{_lambda_.1} parent=0 // pred_fallthru
    _
  // Predicated region
  $region30: #{_lambda_.1} parent=0 // pred_check
    _
  $region31: #{_lambda_.1} parent=0 // pred_check_branch
    %29 = sbr.rel (0) target = $region33
  $region32: #{_lambda_.1} parent=0 // pred_region
    _
  $region33: #{_lambda_.1} parent=0 // pred_fallthru
    _
  // Predicated region
  $region34: #{_lambda_.1} parent=0 // pred_check
    _
  $region35: #{_lambda_.1} parent=0 // pred_check_branch
    %31 = sbr.rel (0) target = $region37
  $region36: #{_lambda_.1} parent=0 // pred_region
    _
  $region37: #{_lambda_.1} parent=0 // pred_fallthru
    _
  %v33 = vld [vmem:[%s0] sm:$0xf]
  %v34 = vld [vmem:[%s0 + $0x4] sm:$0xf]
  %v35 = vld [vmem:[%s0 + $0x8] sm:$0xf]
  %v36 = vld [vmem:[%s0 + $0xc] sm:$0xf]
  %v37 = vld [vmem:[%s0 + $0x10] sm:$0xf]
  %v38 = vld [vmem:[%s0 + $0x14] sm:$0xf]
  %v39 = vld [vmem:[%s0 + $0x18] sm:$0xf]
  %v40 = vld [vmem:[%s0 + $0x1c] sm:$0xf]
  %v41 = vld [vmem:[%s0 + $0x20] sm:$0xf]
  %v42 = vld [vmem:[%s0 + $0x24] sm:$0xf]
  %v43 = vld [vmem:[%s0 + $0x28] sm:$0xf]
  %v44 = vld [vmem:[%s0 + $0x2c] sm:$0xf]
  %v45 = vld [vmem:[%s0 + $0x30] sm:$0xf]
  %v46 = vld [vmem:[%s0 + $0x34] sm:$0xf]
  %v47 = vld [vmem:[%s0 + $0x38] sm:$0xf]
  %v48 = vld [vmem:[%s0 + $0x3c] sm:$0xf]
  %v49 = vld [vmem:[%s0 + $0x40] sm:$0xf]
  %v50 = vld [vmem:[%s0 + $0x44] sm:$0xf]
  %v51 = vld [vmem:[%s0 + $0x48] sm:$0xf]
  %v52 = vld [vmem:[%s0 + $0x4c] sm:$0xf]
  %v53 = vld [vmem:[%s0 + $0x50] sm:$0xf]
  %v54 = vld [vmem:[%s0 + $0x54] sm:$0xf]
  %v55 = vld [vmem:[%s0 + $0x58] sm:$0xf]
  %v56 = vld [vmem:[%s0 + $0x5c] sm:$0xf]
  %v57 = vld [vmem:[%s0 + $0x60] sm:$0xf]
  %v58 = vld [vmem:[%s0 + $0x64] sm:$0xf]
  %v59 = vld [vmem:[%s0 + $0x68] sm:$0xf]
  %v60 = vld [vmem:[%s0 + $0x6c] sm:$0xf]
  %v61 = vld [vmem:[%s0 + $0x70] sm:$0xf]
  %v62 = vld [vmem:[%s0 + $0x74] sm:$0xf]
  %v63 = vld [vmem:[%s0 + $0x78] sm:$0xf]
  %v64 = vld [vmem:[%s0 + $0x7c] sm:$0xf]
  %v65 = vld [vmem:[%s0 + $0x80] sm:$0xf]
  %v66 = vld [vmem:[%s0 + $0x84] sm:$0xf]
  %v67 = vld [vmem:[%s0 + $0x88] sm:$0xf]
  %v68 = vld [vmem:[%s0 + $0x8c] sm:$0xf]
  %v69 = vld [vmem:[%s0 + $0x90] sm:$0xf]
  %v70 = vld [vmem:[%s0 + $0x94] sm:$0xf]
  %v71 = vld [vmem:[%s0 + $0x98] sm:$0xf]
  %v72 = vld [vmem:[%s0 + $0x9c] sm:$0xf]
  %v73 = vld [vmem:[%s0 + $0xa0] sm:$0xf]
  %v74 = vld [vmem:[%s0 + $0xa4] sm:$0xf]
  %v75 = vld [vmem:[%s0 + $0xa8] sm:$0xf]
  %v76 = vld [vmem:[%s0 + $0xac] sm:$0xf]
  %v77 = vld [vmem:[%s0 + $0xb0] sm:$0xf]
  %v78 = vld [vmem:[%s0 + $0xb4] sm:$0xf]
  %v79 = vld [vmem:[%s0 + $0xb8] sm:$0xf]
  %v80 = vld [vmem:[%s0 + $0xbc] sm:$0xf]
  %v81 = vld [vmem:[%s0 + $0xc0] sm:$0xf]
  %v82 = vld [vmem:[%s0 + $0xc4] sm:$0xf]
  %v83 = vld [vmem:[%s0 + $0xc8] sm:$0xf]
  %v84 = vld [vmem:[%s0 + $0xcc] sm:$0xf]
  %v85 = vld [vmem:[%s0 + $0xd0] sm:$0xf]
  %v86 = vld [vmem:[%s0 + $0xd4] sm:$0xf]
  %v87 = vld [vmem:[%s0 + $0xd8] sm:$0xf]
  %v88 = vld [vmem:[%s0 + $0xdc] sm:$0xf]
  %v89 = vld [vmem:[%s0 + $0xe0] sm:$0xf]
  %v90 = vld [vmem:[%s0 + $0xe4] sm:$0xf]
  %v91 = vld [vmem:[%s0 + $0xe8] sm:$0xf]
  %v92 = vld [vmem:[%s0 + $0xec] sm:$0xf]
  %v93 = vld [vmem:[%s0 + $0xf0] sm:$0xf]
  %v94 = vld [vmem:[%s0 + $0xf4] sm:$0xf]
  %v95 = vld [vmem:[%s0 + $0xf8] sm:$0xf]
  %v96 = vld [vmem:[%s0 + $0xfc] sm:$0xf]
  %v97 = vld [vmem:[%s1] sm:$0xf]
  %v98 = vld [vmem:[%s1 + $0x4] sm:$0xf]
  %v99 = vld [vmem:[%s1 + $0x8] sm:$0xf]
  %v100 = vld [vmem:[%s1 + $0xc] sm:$0xf]
  %v101 = vld [vmem:[%s1 + $0x10] sm:$0xf]
  %v102 = vld [vmem:[%s1 + $0x14] sm:$0xf]
  %v103 = vld [vmem:[%s1 + $0x18] sm:$0xf]
  %v104 = vld [vmem:[%s1 + $0x1c] sm:$0xf]
  %v105 = vld [vmem:[%s1 + $0x20] sm:$0xf]
  %v106 = vld [vmem:[%s1 + $0x24] sm:$0xf]
  %v107 = vld [vmem:[%s1 + $0x28] sm:$0xf]
  %v108 = vld [vmem:[%s1 + $0x2c] sm:$0xf]
  %v109 = vld [vmem:[%s1 + $0x30] sm:$0xf]
  %v110 = vld [vmem:[%s1 + $0x34] sm:$0xf]
  %v111 = vld [vmem:[%s1 + $0x38] sm:$0xf]
  %v112 = vld [vmem:[%s1 + $0x3c] sm:$0xf]
  %v113 = vld [vmem:[%s2] sm:$0x1]
  %v115 = vlaneseq
  %v116 = vshrl.u32 %v115, 7
  %v117 = vsub.s32 0, %v116
  %v118 = vrot.slane %v113, %v117
  %v184 = vunpack.c.l.b16 %v33
  %v185 = vunpack.c.l.b16 %v34
  %v186 = vunpack.c.l.b16 %v35
  %v187 = vunpack.c.l.b16 %v36
  %v188 = vunpack.c.l.b16 %v37
  %v189 = vunpack.c.l.b16 %v38
  %v190 = vunpack.c.l.b16 %v39
  %v191 = vunpack.c.l.b16 %v40
  %v192 = vunpack.c.l.b16 %v41
  %v193 = vunpack.c.l.b16 %v42
  %v194 = vunpack.c.l.b16 %v43
  %v195 = vunpack.c.l.b16 %v44
  %v196 = vunpack.c.l.b16 %v45
  %v197 = vunpack.c.l.b16 %v46
  %v198 = vunpack.c.l.b16 %v47
  %v199 = vunpack.c.l.b16 %v48
  %v200 = vunpack.c.l.b16 %v49
  %v201 = vunpack.c.l.b16 %v50
  %v202 = vunpack.c.l.b16 %v51
  %v203 = vunpack.c.l.b16 %v52
  %v204 = vunpack.c.l.b16 %v53
  %v205 = vunpack.c.l.b16 %v54
  %v206 = vunpack.c.l.b16 %v55
  %v207 = vunpack.c.l.b16 %v56
  %v208 = vunpack.c.l.b16 %v57
  %v209 = vunpack.c.l.b16 %v58
  %v210 = vunpack.c.l.b16 %v59
  %v211 = vunpack.c.l.b16 %v60
  %v212 = vunpack.c.l.b16 %v61
  %v213 = vunpack.c.l.b16 %v62
  %v214 = vunpack.c.l.b16 %v63
  %v215 = vunpack.c.l.b16 %v64
  %v216 = vunpack.c.l.b16 %v65
  %v217 = vunpack.c.l.b16 %v66
  %v218 = vunpack.c.l.b16 %v67
  %v219 = vunpack.c.l.b16 %v68
  %v220 = vunpack.c.l.b16 %v69
  %v221 = vunpack.c.l.b16 %v70
  %v222 = vunpack.c.l.b16 %v71
  %v223 = vunpack.c.l.b16 %v72
  %v224 = vunpack.c.l.b16 %v73
  %v225 = vunpack.c.l.b16 %v74
  %v226 = vunpack.c.l.b16 %v75
  %v227 = vunpack.c.l.b16 %v76
  %v228 = vunpack.c.l.b16 %v77
  %v229 = vunpack.c.l.b16 %v78
  %v230 = vunpack.c.l.b16 %v79
  %v231 = vunpack.c.l.b16 %v80
  %v232 = vunpack.c.l.b16 %v81
  %v233 = vunpack.c.l.b16 %v82
  %v234 = vunpack.c.l.b16 %v83
  %v235 = vunpack.c.l.b16 %v84
  %v236 = vunpack.c.l.b16 %v85
  %v237 = vunpack.c.l.b16 %v86
  %v238 = vunpack.c.l.b16 %v87
  %v239 = vunpack.c.l.b16 %v88
  %v240 = vunpack.c.l.b16 %v89
  %v241 = vunpack.c.l.b16 %v90
  %v242 = vunpack.c.l.b16 %v91
  %v243 = vunpack.c.l.b16 %v92
  %v244 = vunpack.c.l.b16 %v93
  %v245 = vunpack.c.l.b16 %v94
  %v246 = vunpack.c.l.b16 %v95
  %v247 = vunpack.c.l.b16 %v96
  %v248 = vpack.c.b16 %v185, %v184
  %v249 = vpack.c.b16 %v187, %v186
  %v250 = vpack.c.b16 %v189, %v188
  %v251 = vpack.c.b16 %v191, %v190
  %v252 = vpack.c.b16 %v193, %v192
  %v253 = vpack.c.b16 %v195, %v194
  %v254 = vpack.c.b16 %v197, %v196
  %v255 = vpack.c.b16 %v199, %v198
  %v256 = vpack.c.b16 %v201, %v200
  %v257 = vpack.c.b16 %v203, %v202
  %v258 = vpack.c.b16 %v205, %v204
  %v259 = vpack.c.b16 %v207, %v206
  %v260 = vpack.c.b16 %v209, %v208
  %v261 = vpack.c.b16 %v211, %v210
  %v262 = vpack.c.b16 %v213, %v212
  %v263 = vpack.c.b16 %v215, %v214
  %v264 = vpack.c.b16 %v217, %v216
  %v265 = vpack.c.b16 %v219, %v218
  %v266 = vpack.c.b16 %v221, %v220
  %v267 = vpack.c.b16 %v223, %v222
  %v268 = vpack.c.b16 %v225, %v224
  %v269 = vpack.c.b16 %v227, %v226
  %v270 = vpack.c.b16 %v229, %v228
  %v271 = vpack.c.b16 %v231, %v230
  %v272 = vpack.c.b16 %v233, %v232
  %v273 = vpack.c.b16 %v235, %v234
  %v274 = vpack.c.b16 %v237, %v236
  %v275 = vpack.c.b16 %v239, %v238
  %v276 = vpack.c.b16 %v241, %v240
  %v277 = vpack.c.b16 %v243, %v242
  %v278 = vpack.c.b16 %v245, %v244
  %v279 = vpack.c.b16 %v247, %v246
  %v328 = vunpack.c.l.b16 %v97
  %v329 = vunpack.c.l.b16 %v98
  %v330 = vunpack.c.l.b16 %v99
  %v331 = vunpack.c.l.b16 %v100
  %v332 = vunpack.c.l.b16 %v101
  %v333 = vunpack.c.l.b16 %v102
  %v334 = vunpack.c.l.b16 %v103
  %v335 = vunpack.c.l.b16 %v104
  %v336 = vunpack.c.l.b16 %v105
  %v337 = vunpack.c.l.b16 %v106
  %v338 = vunpack.c.l.b16 %v107
  %v339 = vunpack.c.l.b16 %v108
  %v340 = vunpack.c.l.b16 %v109
  %v341 = vunpack.c.l.b16 %v110
  %v342 = vunpack.c.l.b16 %v111
  %v343 = vunpack.c.l.b16 %v112
  %v344 = vpack.c.b16 %v329, %v328
  %v345 = vpack.c.b16 %v331, %v330
  %v346 = vpack.c.b16 %v333, %v332
  %v347 = vpack.c.b16 %v335, %v334
  %v348 = vpack.c.b16 %v337, %v336
  %v349 = vpack.c.b16 %v339, %v338
  %v350 = vpack.c.b16 %v341, %v340
  %v351 = vpack.c.b16 %v343, %v342
  %360 = vmatprep.subr.bf16.mxu0 0
  %361 = vmatpush1.bf16.msra.mxu0 %v344
  %362 = vmatprep.subr.bf16.mxu0 0
  %363 = vmatpush1.bf16.msra.mxu0 %v345
  %364 = vmatprep.subr.bf16.mxu0 0
  %365 = vmatpush1.bf16.msra.mxu0 %v346
  %366 = vmatprep.subr.bf16.mxu0 0
  %367 = vmatpush1.bf16.msra.mxu0 %v347
  %368 = vmatprep.subr.bf16.mxu0 0
  %369 = vmatpush1.bf16.msra.mxu0 %v348
  %370 = vmatprep.subr.bf16.mxu0 0
  %371 = vmatpush1.bf16.msra.mxu0 %v349
  %372 = vmatprep.subr.bf16.mxu0 0
  %373 = vmatpush1.bf16.msra.mxu0 %v350
  %374 = vmatprep.subr.bf16.mxu0 0
  %375 = vmatpush1.bf16.msra.mxu0 %v351
  %376 = vmatprep.subr.bf16.mxu0 0
  %377 = vmatpush1.bf16.msra.mxu0 0
  %378 = vmatprep.subr.bf16.mxu0 0
  %379 = vmatpush1.bf16.msra.mxu0 0
  %380 = vmatprep.subr.bf16.mxu0 0
  %381 = vmatpush1.bf16.msra.mxu0 0
  %382 = vmatprep.subr.bf16.mxu0 0
  %383 = vmatpush1.bf16.msra.mxu0 0
  %384 = vmatprep.subr.bf16.mxu0 0
  %385 = vmatpush1.bf16.msra.mxu0 0
  %386 = vmatprep.subr.bf16.mxu0 0
  %387 = vmatpush1.bf16.msra.mxu0 0
  %388 = vmatprep.subr.bf16.mxu0 0
  %389 = vmatpush1.bf16.msra.mxu0 0
  %390 = vmatprep.subr.bf16.mxu0 0
  %391 = vmatpush1.bf16.msra.mxu0 0
  %392 = vmatprep.mubr.bf16.mxu0 0
  %393 = vmatmul.mubr.bf16.gmra.mrb[0].mxu0 %v248
  %v394 = vpop.f32.mrb[0].mxu0
  %v395 = vadd.f32 %v118, %v394
  %v396 = vpop.f32.mrb[0].mxu0
  %v397 = vpop.f32.mrb[0].mxu0
  %v398 = vadd.f32 %v118, %v397
  %v399 = vpop.f32.mrb[0].mxu0
  %400 = vmatprep.mubr.bf16.mxu0 0
  %401 = vmatmul.mubr.bf16.gmra.mrb[0].mxu0 %v249
  %v402 = vpop.f32.mrb[0].mxu0
  %v403 = vadd.f32 %v118, %v402
  %v404 = vpop.f32.mrb[0].mxu0
  %v405 = vpop.f32.mrb[0].mxu0
  %v406 = vadd.f32 %v118, %v405
  %v407 = vpop.f32.mrb[0].mxu0
  %408 = vmatprep.mubr.bf16.mxu0 0
  %409 = vmatmul.mubr.bf16.gmra.mrb[0].mxu0 %v250
  %v410 = vpop.f32.mrb[0].mxu0
  %v411 = vadd.f32 %v118, %v410
  %v412 = vpop.f32.mrb[0].mxu0
  %v413 = vpop.f32.mrb[0].mxu0
  %v414 = vadd.f32 %v118, %v413
  %v415 = vpop.f32.mrb[0].mxu0
  %416 = vmatprep.mubr.bf16.mxu0 0
  %417 = vmatmul.mubr.bf16.gmra.mrb[0].mxu0 %v251
  %v418 = vpop.f32.mrb[0].mxu0
  %v419 = vadd.f32 %v118, %v418
  %v420 = vpop.f32.mrb[0].mxu0
  %v421 = vpop.f32.mrb[0].mxu0
  %v422 = vadd.f32 %v118, %v421
  %v423 = vpop.f32.mrb[0].mxu0
  %424 = vmatprep.mubr.bf16.mxu0 0
  %425 = vmatmul.mubr.bf16.gmra.mrb[0].mxu0 %v252
  %v426 = vpop.f32.mrb[0].mxu0
  %v427 = vadd.f32 %v118, %v426
  %v428 = vpop.f32.mrb[0].mxu0
  %v429 = vpop.f32.mrb[0].mxu0
  %v430 = vadd.f32 %v118, %v429
  %v431 = vpop.f32.mrb[0].mxu0
  %432 = vmatprep.mubr.bf16.mxu0 0
  %433 = vmatmul.mubr.bf16.gmra.mrb[0].mxu0 %v253
  %v434 = vpop.f32.mrb[0].mxu0
  %v435 = vadd.f32 %v118, %v434
  %v436 = vpop.f32.mrb[0].mxu0
  %v437 = vpop.f32.mrb[0].mxu0
  %v438 = vadd.f32 %v118, %v437
  %v439 = vpop.f32.mrb[0].mxu0
  %440 = vmatprep.mubr.bf16.mxu0 0
  %441 = vmatmul.mubr.bf16.gmra.mrb[0].mxu0 %v254
  %v442 = vpop.f32.mrb[0].mxu0
  %v443 = vadd.f32 %v118, %v442
  %v444 = vpop.f32.mrb[0].mxu0
  %v445 = vpop.f32.mrb[0].mxu0
  %v446 = vadd.f32 %v118, %v445
  %v447 = vpop.f32.mrb[0].mxu0
  %448 = vmatprep.mubr.bf16.mxu0 0
  %449 = vmatmul.mubr.bf16.gmra.mrb[0].mxu0 %v255
  %v450 = vpop.f32.mrb[0].mxu0
  %v451 = vadd.f32 %v118, %v450
  %v452 = vpop.f32.mrb[0].mxu0
  %v453 = vpop.f32.mrb[0].mxu0
  %v454 = vadd.f32 %v118, %v453
  %v455 = vpop.f32.mrb[0].mxu0
  %456 = vmatprep.mubr.bf16.mxu0 0
  %457 = vmatmul.mubr.bf16.gmra.mrb[0].mxu0 %v256
  %v458 = vpop.f32.mrb[0].mxu0
  %v459 = vadd.f32 %v118, %v458
  %v460 = vpop.f32.mrb[0].mxu0
  %v461 = vpop.f32.mrb[0].mxu0
  %v462 = vadd.f32 %v118, %v461
  %v463 = vpop.f32.mrb[0].mxu0
  %464 = vmatprep.mubr.bf16.mxu0 0
  %465 = vmatmul.mubr.bf16.gmra.mrb[0].mxu0 %v257
  %v466 = vpop.f32.mrb[0].mxu0
  %v467 = vadd.f32 %v118, %v466
  %v468 = vpop.f32.mrb[0].mxu0
  %v469 = vpop.f32.mrb[0].mxu0
  %v470 = vadd.f32 %v118, %v469
  %v471 = vpop.f32.mrb[0].mxu0
  %472 = vmatprep.mubr.bf16.mxu0 0
  %473 = vmatmul.mubr.bf16.gmra.mrb[0].mxu0 %v258
  %v474 = vpop.f32.mrb[0].mxu0
  %v475 = vadd.f32 %v118, %v474
  %v476 = vpop.f32.mrb[0].mxu0
  %v477 = vpop.f32.mrb[0].mxu0
  %v478 = vadd.f32 %v118, %v477
  %v479 = vpop.f32.mrb[0].mxu0
  %480 = vmatprep.mubr.bf16.mxu0 0
  %481 = vmatmul.mubr.bf16.gmra.mrb[0].mxu0 %v259
  %v482 = vpop.f32.mrb[0].mxu0
  %v483 = vadd.f32 %v118, %v482
  %v484 = vpop.f32.mrb[0].mxu0
  %v485 = vpop.f32.mrb[0].mxu0
  %v486 = vadd.f32 %v118, %v485
  %v487 = vpop.f32.mrb[0].mxu0
  %488 = vmatprep.mubr.bf16.mxu0 0
  %489 = vmatmul.mubr.bf16.gmra.mrb[0].mxu0 %v260
  %v490 = vpop.f32.mrb[0].mxu0
  %v491 = vadd.f32 %v118, %v490
  %v492 = vpop.f32.mrb[0].mxu0
  %v493 = vpop.f32.mrb[0].mxu0
  %v494 = vadd.f32 %v118, %v493
  %v495 = vpop.f32.mrb[0].mxu0
  %496 = vmatprep.mubr.bf16.mxu0 0
  %497 = vmatmul.mubr.bf16.gmra.mrb[0].mxu0 %v261
  %v498 = vpop.f32.mrb[0].mxu0
  %v499 = vadd.f32 %v118, %v498
  %v500 = vpop.f32.mrb[0].mxu0
  %v501 = vpop.f32.mrb[0].mxu0
  %v502 = vadd.f32 %v118, %v501
  %v503 = vpop.f32.mrb[0].mxu0
  %504 = vmatprep.mubr.bf16.mxu0 0
  %505 = vmatmul.mubr.bf16.gmra.mrb[0].mxu0 %v262
  %v506 = vpop.f32.mrb[0].mxu0
  %v507 = vadd.f32 %v118, %v506
  %v508 = vpop.f32.mrb[0].mxu0
  %v509 = vpop.f32.mrb[0].mxu0
  %v510 = vadd.f32 %v118, %v509
  %v511 = vpop.f32.mrb[0].mxu0
  %512 = vmatprep.mubr.bf16.mxu0 0
  %513 = vmatmul.mubr.bf16.gmra.mrb[0].mxu0 %v263
  %v514 = vpop.f32.mrb[0].mxu0
  %v515 = vadd.f32 %v118, %v514
  %v516 = vpop.f32.mrb[0].mxu0
  %v517 = vpop.f32.mrb[0].mxu0
  %v518 = vadd.f32 %v118, %v517
  %v519 = vpop.f32.mrb[0].mxu0
  %520 = vmatprep.mubr.bf16.mxu0 0
  %521 = vmatmul.mubr.bf16.gmra.mrb[0].mxu0 %v264
  %v522 = vpop.f32.mrb[0].mxu0
  %v523 = vadd.f32 %v118, %v522
  %v524 = vpop.f32.mrb[0].mxu0
  %v525 = vpop.f32.mrb[0].mxu0
  %v526 = vadd.f32 %v118, %v525
  %v527 = vpop.f32.mrb[0].mxu0
  %528 = vmatprep.mubr.bf16.mxu0 0
  %529 = vmatmul.mubr.bf16.gmra.mrb[0].mxu0 %v265
  %v530 = vpop.f32.mrb[0].mxu0
  %v531 = vadd.f32 %v118, %v530
  %v532 = vpop.f32.mrb[0].mxu0
  %v533 = vpop.f32.mrb[0].mxu0
  %v534 = vadd.f32 %v118, %v533
  %v535 = vpop.f32.mrb[0].mxu0
  %536 = vmatprep.mubr.bf16.mxu0 0
  %537 = vmatmul.mubr.bf16.gmra.mrb[0].mxu0 %v266
  %v538 = vpop.f32.mrb[0].mxu0
  %v539 = vadd.f32 %v118, %v538
  %v540 = vpop.f32.mrb[0].mxu0
  %v541 = vpop.f32.mrb[0].mxu0
  %v542 = vadd.f32 %v118, %v541
  %v543 = vpop.f32.mrb[0].mxu0
  %544 = vmatprep.mubr.bf16.mxu0 0
  %545 = vmatmul.mubr.bf16.gmra.mrb[0].mxu0 %v267
  %v546 = vpop.f32.mrb[0].mxu0
  %v547 = vadd.f32 %v118, %v546
  %v548 = vpop.f32.mrb[0].mxu0
  %v549 = vpop.f32.mrb[0].mxu0
  %v550 = vadd.f32 %v118, %v549
  %v551 = vpop.f32.mrb[0].mxu0
  %552 = vmatprep.mubr.bf16.mxu0 0
  %553 = vmatmul.mubr.bf16.gmra.mrb[0].mxu0 %v268
  %v554 = vpop.f32.mrb[0].mxu0
  %v555 = vadd.f32 %v118, %v554
  %v556 = vpop.f32.mrb[0].mxu0
  %v557 = vpop.f32.mrb[0].mxu0
  %v558 = vadd.f32 %v118, %v557
  %v559 = vpop.f32.mrb[0].mxu0
  %560 = vmatprep.mubr.bf16.mxu0 0
  %561 = vmatmul.mubr.bf16.gmra.mrb[0].mxu0 %v269
  %v562 = vpop.f32.mrb[0].mxu0
  %v563 = vadd.f32 %v118, %v562
  %v564 = vpop.f32.mrb[0].mxu0
  %v565 = vpop.f32.mrb[0].mxu0
  %v566 = vadd.f32 %v118, %v565
  %v567 = vpop.f32.mrb[0].mxu0
  %568 = vmatprep.mubr.bf16.mxu0 0
  %569 = vmatmul.mubr.bf16.gmra.mrb[0].mxu0 %v270
  %v570 = vpop.f32.mrb[0].mxu0
  %v571 = vadd.f32 %v118, %v570
  %v572 = vpop.f32.mrb[0].mxu0
  %v573 = vpop.f32.mrb[0].mxu0
  %v574 = vadd.f32 %v118, %v573
  %v575 = vpop.f32.mrb[0].mxu0
  %576 = vmatprep.mubr.bf16.mxu0 0
  %577 = vmatmul.mubr.bf16.gmra.mrb[0].mxu0 %v271
  %v578 = vpop.f32.mrb[0].mxu0
  %v579 = vadd.f32 %v118, %v578
  %v580 = vpop.f32.mrb[0].mxu0
  %v581 = vpop.f32.mrb[0].mxu0
  %v582 = vadd.f32 %v118, %v581
  %v583 = vpop.f32.mrb[0].mxu0
  %584 = vmatprep.mubr.bf16.mxu0 0
  %585 = vmatmul.mubr.bf16.gmra.mrb[0].mxu0 %v272
  %v586 = vpop.f32.mrb[0].mxu0
  %v587 = vadd.f32 %v118, %v586
  %v588 = vpop.f32.mrb[0].mxu0
  %v589 = vpop.f32.mrb[0].mxu0
  %v590 = vadd.f32 %v118, %v589
  %v591 = vpop.f32.mrb[0].mxu0
  %592 = vmatprep.mubr.bf16.mxu0 0
  %593 = vmatmul.mubr.bf16.gmra.mrb[0].mxu0 %v273
  %v594 = vpop.f32.mrb[0].mxu0
  %v595 = vadd.f32 %v118, %v594
  %v596 = vpop.f32.mrb[0].mxu0
  %v597 = vpop.f32.mrb[0].mxu0
  %v598 = vadd.f32 %v118, %v597
  %v599 = vpop.f32.mrb[0].mxu0
  %600 = vmatprep.mubr.bf16.mxu0 0
  %601 = vmatmul.mubr.bf16.gmra.mrb[0].mxu0 %v274
  %v602 = vpop.f32.mrb[0].mxu0
  %v603 = vadd.f32 %v118, %v602
  %v604 = vpop.f32.mrb[0].mxu0
  %v605 = vpop.f32.mrb[0].mxu0
  %v606 = vadd.f32 %v118, %v605
  %v607 = vpop.f32.mrb[0].mxu0
  %608 = vmatprep.mubr.bf16.mxu0 0
  %609 = vmatmul.mubr.bf16.gmra.mrb[0].mxu0 %v275
  %v610 = vpop.f32.mrb[0].mxu0
  %v611 = vadd.f32 %v118, %v610
  %v612 = vpop.f32.mrb[0].mxu0
  %v613 = vpop.f32.mrb[0].mxu0
  %v614 = vadd.f32 %v118, %v613
  %v615 = vpop.f32.mrb[0].mxu0
  %616 = vmatprep.mubr.bf16.mxu0 0
  %617 = vmatmul.mubr.bf16.gmra.mrb[0].mxu0 %v276
  %v618 = vpop.f32.mrb[0].mxu0
  %v619 = vadd.f32 %v118, %v618
  %v620 = vpop.f32.mrb[0].mxu0
  %v621 = vpop.f32.mrb[0].mxu0
  %v622 = vadd.f32 %v118, %v621
  %v623 = vpop.f32.mrb[0].mxu0
  %624 = vmatprep.mubr.bf16.mxu0 0
  %625 = vmatmul.mubr.bf16.gmra.mrb[0].mxu0 %v277
  %v626 = vpop.f32.mrb[0].mxu0
  %v627 = vadd.f32 %v118, %v626
  %v628 = vpop.f32.mrb[0].mxu0
  %v629 = vpop.f32.mrb[0].mxu0
  %v630 = vadd.f32 %v118, %v629
  %v631 = vpop.f32.mrb[0].mxu0
  %632 = vmatprep.mubr.bf16.mxu0 0
  %633 = vmatmul.mubr.bf16.gmra.mrb[0].mxu0 %v278
  %v634 = vpop.f32.mrb[0].mxu0
  %v635 = vadd.f32 %v118, %v634
  %v636 = vpop.f32.mrb[0].mxu0
  %v637 = vpop.f32.mrb[0].mxu0
  %v638 = vadd.f32 %v118, %v637
  %v639 = vpop.f32.mrb[0].mxu0
  %640 = vmatprep.mubr.bf16.mxu0 0
  %641 = vmatmul.mubr.bf16.gmra.mrb[0].mxu0 %v279
  %v642 = vpop.f32.mrb[0].mxu0
  %v643 = vadd.f32 %v118, %v642
  %v644 = vpop.f32.mrb[0].mxu0
  %v645 = vpop.f32.mrb[0].mxu0
  %v646 = vadd.f32 %v118, %v645
  %v647 = vpop.f32.mrb[0].mxu0
  %648 = vdwg.mxu0
  %v649 = vmax.f32 %v395, 0.0
  %v650 = vmax.f32 %v398, 0.0
  %v651 = vmax.f32 %v403, 0.0
  %v652 = vmax.f32 %v406, 0.0
  %v653 = vmax.f32 %v411, 0.0
  %v654 = vmax.f32 %v414, 0.0
  %v655 = vmax.f32 %v419, 0.0
  %v656 = vmax.f32 %v422, 0.0
  %v657 = vmax.f32 %v427, 0.0
  %v658 = vmax.f32 %v430, 0.0
  %v659 = vmax.f32 %v435, 0.0
  %v660 = vmax.f32 %v438, 0.0
  %v661 = vmax.f32 %v443, 0.0
  %v662 = vmax.f32 %v446, 0.0
  %v663 = vmax.f32 %v451, 0.0
  %v664 = vmax.f32 %v454, 0.0
  %v665 = vmax.f32 %v459, 0.0
  %v666 = vmax.f32 %v462, 0.0
  %v667 = vmax.f32 %v467, 0.0
  %v668 = vmax.f32 %v470, 0.0
  %v669 = vmax.f32 %v475, 0.0
  %v670 = vmax.f32 %v478, 0.0
  %v671 = vmax.f32 %v483, 0.0
  %v672 = vmax.f32 %v486, 0.0
  %v673 = vmax.f32 %v491, 0.0
  %v674 = vmax.f32 %v494, 0.0
  %v675 = vmax.f32 %v499, 0.0
  %v676 = vmax.f32 %v502, 0.0
  %v677 = vmax.f32 %v507, 0.0
  %v678 = vmax.f32 %v510, 0.0
  %v679 = vmax.f32 %v515, 0.0
  %v680 = vmax.f32 %v518, 0.0
  %v681 = vmax.f32 %v523, 0.0
  %v682 = vmax.f32 %v526, 0.0
  %v683 = vmax.f32 %v531, 0.0
  %v684 = vmax.f32 %v534, 0.0
  %v685 = vmax.f32 %v539, 0.0
  %v686 = vmax.f32 %v542, 0.0
  %v687 = vmax.f32 %v547, 0.0
  %v688 = vmax.f32 %v550, 0.0
  %v689 = vmax.f32 %v555, 0.0
  %v690 = vmax.f32 %v558, 0.0
  %v691 = vmax.f32 %v563, 0.0
  %v692 = vmax.f32 %v566, 0.0
  %v693 = vmax.f32 %v571, 0.0
  %v694 = vmax.f32 %v574, 0.0
  %v695 = vmax.f32 %v579, 0.0
  %v696 = vmax.f32 %v582, 0.0
  %v697 = vmax.f32 %v587, 0.0
  %v698 = vmax.f32 %v590, 0.0
  %v699 = vmax.f32 %v595, 0.0
  %v700 = vmax.f32 %v598, 0.0
  %v701 = vmax.f32 %v603, 0.0
  %v702 = vmax.f32 %v606, 0.0
  %v703 = vmax.f32 %v611, 0.0
  %v704 = vmax.f32 %v614, 0.0
  %v705 = vmax.f32 %v619, 0.0
  %v706 = vmax.f32 %v622, 0.0
  %v707 = vmax.f32 %v627, 0.0
  %v708 = vmax.f32 %v630, 0.0
  %v709 = vmax.f32 %v635, 0.0
  %v710 = vmax.f32 %v638, 0.0
  %v711 = vmax.f32 %v643, 0.0
  %v712 = vmax.f32 %v646, 0.0
  %713 = vst [vmem:[#allocation2] sm:$0xff] 0.0
  %v714 = vadd.f32 %v649, %v650
  %v715 = vadd.f32 %v714, %v651
  %v716 = vadd.f32 %v715, %v652
  %v717 = vadd.f32 %v716, %v653
  %v718 = vadd.f32 %v717, %v654
  %v719 = vadd.f32 %v718, %v655
  %v720 = vadd.f32 %v719, %v656
  %v721 = vadd.f32 %v720, %v657
  %v722 = vadd.f32 %v721, %v658
  %v723 = vadd.f32 %v722, %v659
  %v724 = vadd.f32 %v723, %v660
  %v725 = vadd.f32 %v724, %v661
  %v726 = vadd.f32 %v725, %v662
  %v727 = vadd.f32 %v726, %v663
  %v728 = vadd.f32 %v727, %v664
  %v729 = vadd.f32 %v728, %v665
  %v730 = vadd.f32 %v729, %v666
  %v731 = vadd.f32 %v730, %v667
  %v732 = vadd.f32 %v731, %v668
  %v733 = vadd.f32 %v732, %v669
  %v734 = vadd.f32 %v733, %v670
  %v735 = vadd.f32 %v734, %v671
  %v736 = vadd.f32 %v735, %v672
  %v737 = vadd.f32 %v736, %v673
  %v738 = vadd.f32 %v737, %v674
  %v739 = vadd.f32 %v738, %v675
  %v740 = vadd.f32 %v739, %v676
  %v741 = vadd.f32 %v740, %v677
  %v742 = vadd.f32 %v741, %v678
  %v743 = vadd.f32 %v742, %v679
  %v744 = vadd.f32 %v743, %v680
  %v745 = vrot.slane %v744, 4
  %v746 = vadd.f32 %v744, %v745
  %v747 = vrot.slane %v746, 2
  %v748 = vadd.f32 %v746, %v747
  %v749 = vrot.slane %v748, 1
  %v750 = vadd.f32 %v748, %v749
  %v751 = vmul.f32 %v750, 0.00390625
  %752 = vst [vmem:[#allocation2] sm:$0x1] %v751
  %v753 = vadd.f32 %v681, %v682
  %v754 = vadd.f32 %v753, %v683
  %v755 = vadd.f32 %v754, %v684
  %v756 = vadd.f32 %v755, %v685
  %v757 = vadd.f32 %v756, %v686
  %v758 = vadd.f32 %v757, %v687
  %v759 = vadd.f32 %v758, %v688
  %v760 = vadd.f32 %v759, %v689
  %v761 = vadd.f32 %v760, %v690
  %v762 = vadd.f32 %v761, %v691
  %v763 = vadd.f32 %v762, %v692
  %v764 = vadd.f32 %v763, %v693
  %v765 = vadd.f32 %v764, %v694
  %v766 = vadd.f32 %v765, %v695
  %v767 = vadd.f32 %v766, %v696
  %v768 = vadd.f32 %v767, %v697
  %v769 = vadd.f32 %v768, %v698
  %v770 = vadd.f32 %v769, %v699
  %v771 = vadd.f32 %v770, %v700
  %v772 = vadd.f32 %v771, %v701
  %v773 = vadd.f32 %v772, %v702
  %v774 = vadd.f32 %v773, %v703
  %v775 = vadd.f32 %v774, %v704
  %v776 = vadd.f32 %v775, %v705
  %v777 = vadd.f32 %v776, %v706
  %v778 = vadd.f32 %v777, %v707
  %v779 = vadd.f32 %v778, %v708
  %v780 = vadd.f32 %v779, %v709
  %v781 = vadd.f32 %v780, %v710
  %v782 = vadd.f32 %v781, %v711
  %v783 = vadd.f32 %v782, %v712
  %v784 = vrot.slane %v783, 4
  %v785 = vadd.f32 %v783, %v784
  %v786 = vrot.slane %v785, 2
  %v787 = vadd.f32 %v785, %v786
  %v788 = vrot.slane %v787, 1
  %v789 = vadd.f32 %v787, %v788
  %v790 = vmul.f32 %v789, 0.00390625
  %791 = vst [vmem:[#allocation2 + $0x1] sm:$0x1] %v790
  %v792 = vld [vmem:[#allocation2] sm:$0xff]
  %v793 = vpack.c.bf16 %v792, %v792
  %v794 = vld [vmem:[%s3] sm:$0xf]
  %v795 = vld [vmem:[%s3 + $0x4] sm:$0xf]
  %v796 = vld [vmem:[%s3 + $0x8] sm:$0xf]
  %v797 = vld [vmem:[%s3 + $0xc] sm:$0xf]
  %v798 = vld [vmem:[%s3 + $0x10] sm:$0xf]
  %v799 = vld [vmem:[%s3 + $0x14] sm:$0xf]
  %v800 = vld [vmem:[%s3 + $0x18] sm:$0xf]
  %v801 = vld [vmem:[%s3 + $0x1c] sm:$0xf]
  %v802 = vld [vmem:[%s3 + $0x20] sm:$0xf]
  %v803 = vld [vmem:[%s3 + $0x24] sm:$0xf]
  %v804 = vld [vmem:[%s3 + $0x28] sm:$0xf]
  %v805 = vld [vmem:[%s3 + $0x2c] sm:$0xf]
  %v806 = vld [vmem:[%s3 + $0x30] sm:$0xf]
  %v807 = vld [vmem:[%s3 + $0x34] sm:$0xf]
  %v808 = vld [vmem:[%s3 + $0x38] sm:$0xf]
  %v809 = vld [vmem:[%s3 + $0x3c] sm:$0xf]
  %v810 = vld [vmem:[%s4] sm:$0x1]
  %v812 = vlaneseq
  %v813 = vshrl.u32 %v812, 7
  %v814 = vsub.s32 0, %v813
  %v815 = vrot.slane %v810, %v814
  %v833 = vunpack.c.l.b16 %v794
  %v834 = vunpack.c.l.b16 %v795
  %v835 = vunpack.c.l.b16 %v796
  %v836 = vunpack.c.l.b16 %v797
  %v837 = vunpack.c.l.b16 %v798
  %v838 = vunpack.c.l.b16 %v799
  %v839 = vunpack.c.l.b16 %v800
  %v840 = vunpack.c.l.b16 %v801
  %v841 = vunpack.c.l.b16 %v802
  %v842 = vunpack.c.l.b16 %v803
  %v843 = vunpack.c.l.b16 %v804
  %v844 = vunpack.c.l.b16 %v805
  %v845 = vunpack.c.l.b16 %v806
  %v846 = vunpack.c.l.b16 %v807
  %v847 = vunpack.c.l.b16 %v808
  %v848 = vunpack.c.l.b16 %v809
  %v849 = vpack.c.b16 %v834, %v833
  %v850 = vpack.c.b16 %v836, %v835
  %v851 = vpack.c.b16 %v838, %v837
  %v852 = vpack.c.b16 %v840, %v839
  %v853 = vpack.c.b16 %v842, %v841
  %v854 = vpack.c.b16 %v844, %v843
  %v855 = vpack.c.b16 %v846, %v845
  %v856 = vpack.c.b16 %v848, %v847
  %865 = vmatprep.subr.bf16.mxu0 0
  %866 = vmatpush1.bf16.msra.mxu0 %v849
  %867 = vmatprep.subr.bf16.mxu0 0
  %868 = vmatpush1.bf16.msra.mxu0 %v850
  %869 = vmatprep.subr.bf16.mxu0 0
  %870 = vmatpush1.bf16.msra.mxu0 %v851
  %871 = vmatprep.subr.bf16.mxu0 0
  %872 = vmatpush1.bf16.msra.mxu0 %v852
  %873 = vmatprep.subr.bf16.mxu0 0
  %874 = vmatpush1.bf16.msra.mxu0 %v853
  %875 = vmatprep.subr.bf16.mxu0 0
  %876 = vmatpush1.bf16.msra.mxu0 %v854
  %877 = vmatprep.subr.bf16.mxu0 0
  %878 = vmatpush1.bf16.msra.mxu0 %v855
  %879 = vmatprep.subr.bf16.mxu0 0
  %880 = vmatpush1.bf16.msra.mxu0 %v856
  %881 = vmatprep.subr.bf16.mxu0 0
  %882 = vmatpush1.bf16.msra.mxu0 0
  %883 = vmatprep.subr.bf16.mxu0 0
  %884 = vmatpush1.bf16.msra.mxu0 0
  %885 = vmatprep.subr.bf16.mxu0 0
  %886 = vmatpush1.bf16.msra.mxu0 0
  %887 = vmatprep.subr.bf16.mxu0 0
  %888 = vmatpush1.bf16.msra.mxu0 0
  %889 = vmatprep.subr.bf16.mxu0 0
  %890 = vmatpush1.bf16.msra.mxu0 0
  %891 = vmatprep.subr.bf16.mxu0 0
  %892 = vmatpush1.bf16.msra.mxu0 0
  %893 = vmatprep.subr.bf16.mxu0 0
  %894 = vmatpush1.bf16.msra.mxu0 0
  %895 = vmatprep.subr.bf16.mxu0 0
  %896 = vmatpush1.bf16.msra.mxu0 0
  %897 = vmatprep.mubr.bf16.mxu0 0
  %898 = vmatmul.mubr.bf16.gmra.mrb[0].mxu0 %v793
  %v899 = vpop.f32.mrb[0].mxu0
  %v900 = vadd.f32 %v815, %v899
  %v901 = vpop.f32.mrb[0].mxu0
  %v902 = vpop.f32.mrb[0].mxu0
  %v903 = vpop.f32.mrb[0].mxu0
  %904 = vdwg.mxu0
  %v905 = vmax.f32 %v900, 0.0
  %v906 = vpack.c.bf16 %v905, %v905
  %v907 = vld [vmem:[%s5] sm:$0xf]
  %v908 = vld [vmem:[%s5 + $0x4] sm:$0xf]
  %v909 = vld [vmem:[%s5 + $0x8] sm:$0xf]
  %v910 = vld [vmem:[%s5 + $0xc] sm:$0xf]
  %v911 = vld [vmem:[%s5 + $0x10] sm:$0xf]
  %v912 = vld [vmem:[%s5 + $0x14] sm:$0xf]
  %v913 = vld [vmem:[%s5 + $0x18] sm:$0xf]
  %v914 = vld [vmem:[%s5 + $0x1c] sm:$0xf]
  %v915 = vld [vmem:[%s5 + $0x20] sm:$0xf]
  %v916 = vld [vmem:[%s5 + $0x24] sm:$0xf]
  %v917 = vld [vmem:[%s5 + $0x28] sm:$0xf]
  %v918 = vld [vmem:[%s5 + $0x2c] sm:$0xf]
  %v919 = vld [vmem:[%s5 + $0x30] sm:$0xf]
  %v920 = vld [vmem:[%s5 + $0x34] sm:$0xf]
  %v921 = vld [vmem:[%s5 + $0x38] sm:$0xf]
  %v922 = vld [vmem:[%s5 + $0x3c] sm:$0xf]
  %v923 = vld [vmem:[%s6] sm:$0x1]
  %v925 = vlaneseq
  %v926 = vshrl.u32 %v925, 7
  %v927 = vsub.s32 0, %v926
  %v928 = vrot.slane %v923, %v927
  %v946 = vunpack.c.l.b16 %v907
  %v947 = vunpack.c.l.b16 %v908
  %v948 = vunpack.c.l.b16 %v909
  %v949 = vunpack.c.l.b16 %v910
  %v950 = vunpack.c.l.b16 %v911
  %v951 = vunpack.c.l.b16 %v912
  %v952 = vunpack.c.l.b16 %v913
  %v953 = vunpack.c.l.b16 %v914
  %v954 = vunpack.c.l.b16 %v915
  %v955 = vunpack.c.l.b16 %v916
  %v956 = vunpack.c.l.b16 %v917
  %v957 = vunpack.c.l.b16 %v918
  %v958 = vunpack.c.l.b16 %v919
  %v959 = vunpack.c.l.b16 %v920
  %v960 = vunpack.c.l.b16 %v921
  %v961 = vunpack.c.l.b16 %v922
  %v962 = vpack.c.b16 %v947, %v946
  %v963 = vpack.c.b16 %v949, %v948
  %v964 = vpack.c.b16 %v951, %v950
  %v965 = vpack.c.b16 %v953, %v952
  %v966 = vpack.c.b16 %v955, %v954
  %v967 = vpack.c.b16 %v957, %v956
  %v968 = vpack.c.b16 %v959, %v958
  %v969 = vpack.c.b16 %v961, %v960
  %978 = vmatprep.subr.bf16.mxu0 0
  %979 = vmatpush1.bf16.msra.mxu0 %v962
  %980 = vmatprep.subr.bf16.mxu0 0
  %981 = vmatpush1.bf16.msra.mxu0 %v963
  %982 = vmatprep.subr.bf16.mxu0 0
  %983 = vmatpush1.bf16.msra.mxu0 %v964
  %984 = vmatprep.subr.bf16.mxu0 0
  %985 = vmatpush1.bf16.msra.mxu0 %v965
  %986 = vmatprep.subr.bf16.mxu0 0
  %987 = vmatpush1.bf16.msra.mxu0 %v966
  %988 = vmatprep.subr.bf16.mxu0 0
  %989 = vmatpush1.bf16.msra.mxu0 %v967
  %990 = vmatprep.subr.bf16.mxu0 0
  %991 = vmatpush1.bf16.msra.mxu0 %v968
  %992 = vmatprep.subr.bf16.mxu0 0
  %993 = vmatpush1.bf16.msra.mxu0 %v969
  %994 = vmatprep.subr.bf16.mxu0 0
  %995 = vmatpush1.bf16.msra.mxu0 0
  %996 = vmatprep.subr.bf16.mxu0 0
  %997 = vmatpush1.bf16.msra.mxu0 0
  %998 = vmatprep.subr.bf16.mxu0 0
  %999 = vmatpush1.bf16.msra.mxu0 0
  %1000 = vmatprep.subr.bf16.mxu0 0
  %1001 = vmatpush1.bf16.msra.mxu0 0
  %1002 = vmatprep.subr.bf16.mxu0 0
  %1003 = vmatpush1.bf16.msra.mxu0 0
  %1004 = vmatprep.subr.bf16.mxu0 0
  %1005 = vmatpush1.bf16.msra.mxu0 0
  %1006 = vmatprep.subr.bf16.mxu0 0
  %1007 = vmatpush1.bf16.msra.mxu0 0
  %1008 = vmatprep.subr.bf16.mxu0 0
  %1009 = vmatpush1.bf16.msra.mxu0 0
  %1010 = vmatprep.mubr.bf16.mxu0 0
  %1011 = vmatmul.mubr.bf16.gmra.mrb[0].mxu0 %v906
  %v1012 = vpop.f32.mrb[0].mxu0
  %v1013 = vadd.f32 %v928, %v1012
  %v1014 = vpop.f32.mrb[0].mxu0
  %v1015 = vpop.f32.mrb[0].mxu0
  %v1016 = vpop.f32.mrb[0].mxu0
  %1017 = vdwg.mxu0
  %v1018 = vmax.f32 %v1013, 0.0
  %v1019 = vpack.c.bf16 %v1018, %v1018
  %v1020 = vld [vmem:[%s7] sm:$0xf]
  %v1021 = vld [vmem:[%s7 + $0x4] sm:$0xf]
  %v1022 = vld [vmem:[%s7 + $0x8] sm:$0xf]
  %v1023 = vld [vmem:[%s7 + $0xc] sm:$0xf]
  %v1024 = vld [vmem:[%s7 + $0x10] sm:$0xf]
  %v1025 = vld [vmem:[%s7 + $0x14] sm:$0xf]
  %v1026 = vld [vmem:[%s7 + $0x18] sm:$0xf]
  %v1027 = vld [vmem:[%s7 + $0x1c] sm:$0xf]
  %v1028 = vld [vmem:[%s7 + $0x20] sm:$0xf]
  %v1029 = vld [vmem:[%s7 + $0x24] sm:$0xf]
  %v1030 = vld [vmem:[%s7 + $0x28] sm:$0xf]
  %v1031 = vld [vmem:[%s7 + $0x2c] sm:$0xf]
  %v1032 = vld [vmem:[%s7 + $0x30] sm:$0xf]
  %v1033 = vld [vmem:[%s7 + $0x34] sm:$0xf]
  %v1034 = vld [vmem:[%s7 + $0x38] sm:$0xf]
  %v1035 = vld [vmem:[%s7 + $0x3c] sm:$0xf]
  %v1036 = vld [vmem:[%s8] sm:$0x1]
  %v1038 = vlaneseq
  %v1039 = vshrl.u32 %v1038, 7
  %v1040 = vsub.s32 0, %v1039
  %v1041 = vrot.slane %v1036, %v1040
  %v1059 = vunpack.c.l.b16 %v1020
  %v1060 = vunpack.c.l.b16 %v1021
  %v1061 = vunpack.c.l.b16 %v1022
  %v1062 = vunpack.c.l.b16 %v1023
  %v1063 = vunpack.c.l.b16 %v1024
  %v1064 = vunpack.c.l.b16 %v1025
  %v1065 = vunpack.c.l.b16 %v1026
  %v1066 = vunpack.c.l.b16 %v1027
  %v1067 = vunpack.c.l.b16 %v1028
  %v1068 = vunpack.c.l.b16 %v1029
  %v1069 = vunpack.c.l.b16 %v1030
  %v1070 = vunpack.c.l.b16 %v1031
  %v1071 = vunpack.c.l.b16 %v1032
  %v1072 = vunpack.c.l.b16 %v1033
  %v1073 = vunpack.c.l.b16 %v1034
  %v1074 = vunpack.c.l.b16 %v1035
  %v1075 = vpack.c.b16 %v1060, %v1059
  %v1076 = vpack.c.b16 %v1062, %v1061
  %v1077 = vpack.c.b16 %v1064, %v1063
  %v1078 = vpack.c.b16 %v1066, %v1065
  %v1079 = vpack.c.b16 %v1068, %v1067
  %v1080 = vpack.c.b16 %v1070, %v1069
  %v1081 = vpack.c.b16 %v1072, %v1071
  %v1082 = vpack.c.b16 %v1074, %v1073
  %1091 = vmatprep.subr.bf16.mxu0 0
  %1092 = vmatpush1.bf16.msra.mxu0 %v1075
  %1093 = vmatprep.subr.bf16.mxu0 0
  %1094 = vmatpush1.bf16.msra.mxu0 %v1076
  %1095 = vmatprep.subr.bf16.mxu0 0
  %1096 = vmatpush1.bf16.msra.mxu0 %v1077
  %1097 = vmatprep.subr.bf16.mxu0 0
  %1098 = vmatpush1.bf16.msra.mxu0 %v1078
  %1099 = vmatprep.subr.bf16.mxu0 0
  %1100 = vmatpush1.bf16.msra.mxu0 %v1079
  %1101 = vmatprep.subr.bf16.mxu0 0
  %1102 = vmatpush1.bf16.msra.mxu0 %v1080
  %1103 = vmatprep.subr.bf16.mxu0 0
  %1104 = vmatpush1.bf16.msra.mxu0 %v1081
  %1105 = vmatprep.subr.bf16.mxu0 0
  %1106 = vmatpush1.bf16.msra.mxu0 %v1082
  %1107 = vmatprep.subr.bf16.mxu0 0
  %1108 = vmatpush1.bf16.msra.mxu0 0
  %1109 = vmatprep.subr.bf16.mxu0 0
  %1110 = vmatpush1.bf16.msra.mxu0 0
  %1111 = vmatprep.subr.bf16.mxu0 0
  %1112 = vmatpush1.bf16.msra.mxu0 0
  %1113 = vmatprep.subr.bf16.mxu0 0
  %1114 = vmatpush1.bf16.msra.mxu0 0
  %1115 = vmatprep.subr.bf16.mxu0 0
  %1116 = vmatpush1.bf16.msra.mxu0 0
  %1117 = vmatprep.subr.bf16.mxu0 0
  %1118 = vmatpush1.bf16.msra.mxu0 0
  %1119 = vmatprep.subr.bf16.mxu0 0
  %1120 = vmatpush1.bf16.msra.mxu0 0
  %1121 = vmatprep.subr.bf16.mxu0 0
  %1122 = vmatpush1.bf16.msra.mxu0 0
  %1123 = vmatprep.mubr.bf16.mxu0 0
  %1124 = vmatmul.mubr.bf16.gmra.mrb[0].mxu0 %v1019
  %v1125 = vpop.f32.mrb[0].mxu0
  %v1126 = vadd.f32 %v1041, %v1125
  %v1127 = vpop.f32.mrb[0].mxu0
  %v1128 = vpop.f32.mrb[0].mxu0
  %v1129 = vpop.f32.mrb[0].mxu0
  %1130 = vdwg.mxu0
  %v1131 = vlaneseq
  %v1132 = vand.u32 %v1131, 127
  %vm1133 = vcmp.lt.s32.totalorder %v1132, 8
  %v1134 = vsel %vm1133, %v1126, -1e+30
  %1135 = vmax.xlane.f32.xlu0 %v1134
  %v1136 = vpop.xlane.xlu0 %1135
  %v1137 = vsub.f32 %v1134, %v1136
  %v1138 = vmul.f32 %v1137, 1.442695
  %v1139 = vpow.pop %v1138
  %1140 = vadd.xlane.f32.xlu0 %v1139
  %v1141 = vpop.xlane.xlu0 %1140
  %v1142 = vrcp.pop %v1141
  %v1143 = vmul.f32 %v1139, %v1142
  %1144 = vst [vmem:[%s9] sm:$0xff] %v1143
  // Predicated region
  $region38: #{_lambda_.1} parent=0 // pred_check
    _
  $region39: #{_lambda_.1} parent=0 // pred_check_branch
    %1146 = sbr.rel (0) target = $region41
  $region40: #{_lambda_.1} parent=0 // pred_region
    _
  $region41: #{_lambda_.1} parent=0 // pred_fallthru
    _
  // Predicated region
  $region42: #{_lambda_.1} parent=0 // pred_check
    _
  $region43: #{_lambda_.1} parent=0 // pred_check_branch
    %1148 = sbr.rel (0) target = $region45
  $region44: #{_lambda_.1} parent=0 // pred_region
    _
  $region45: #{_lambda_.1} parent=0 // pred_fallthru
    _

</llo_original>
